<compile_context>
chip_gen: v5e
topology: v5e:2x2
jax: 0.10.0
libtpu: 0.0.40
codegen_flags: <defaults>
</compile_context>

<pallas_src>
import functools

import jax
import jax.numpy as jnp
from jax import lax
from jax.experimental import pallas as pl
from jax.experimental.pallas import tpu as pltpu


# ----------------------------------------------------------------------------
# Pallas kernel: per-image loss terms (one image per grid step, parallel axis).
# ----------------------------------------------------------------------------
def _multibox_loss_kernel(loc_p_ref, loc_t_ref, conf_T_ref, conf_t_row_ref,
                          loss_l_ref, loss_c_ref, npos_ref, l_scr,
                          *, num_classes, num_priors_real, negpos_ratio,
                          rank_strip):
    C = num_classes
    P = conf_T_ref.shape[1]                 # padded prior count (lane axis)
    n_strips = P // rank_strip

    # --- per-prior masks / counts (row oriented, lane dense) ----------------
    conf_t_row = conf_t_row_ref[...]                        # (1, P) i32
    valid = conf_t_row >= 0                                 # padded lanes: -1
    pos_row = conf_t_row > 0                                # (1, P) bool
    pos_f = pos_row.astype(jnp.float32)
    num_pos = jnp.sum(pos_f, axis=(0, 1), keepdims=True)    # (1, 1)

    # --- localization: smooth L1 over positive priors -----------------------
    d = loc_p_ref[...].astype(jnp.float32) - loc_t_ref[...].astype(jnp.float32)
    ad = jnp.abs(d)
    sl1 = jnp.where(ad < 1.0, 0.5 * d * d, ad - 0.5)        # (4, P)
    loss_l = jnp.sum(sl1 * pos_f, axis=(0, 1), keepdims=True)

    # --- per-prior cross entropy: logsumexp - conf[target], single source ---
    conf_T = conf_T_ref[...].astype(jnp.float32)            # (C, P)
    m = jnp.max(conf_T, axis=0, keepdims=True)
    lse = m + jnp.log(jnp.sum(jnp.exp(conf_T - m), axis=0, keepdims=True))
    cls_iota = lax.broadcasted_iota(jnp.int32, (C, P), 0)
    gathered = jnp.sum(jnp.where(cls_iota == conf_t_row, conf_T, 0.0),
                       axis=0, keepdims=True)
    ce_row = jnp.where(valid, lse - gathered, 0.0)           # (1, P)

    # Mining loss: positives -> 0 (reference semantics); padded lanes -> -big
    # so they can never outrank (or tie-beat) a real prior.
    l_row = jnp.where(pos_row, 0.0, ce_row)
    l_row = jnp.where(valid, l_row, jnp.float32(-1e30))      # (1, P)
    l_scr[...] = l_row          # stash in VMEM so strips can slice with pl.ds

    # --- hard negative mining: stable descending rank, strip tiled ----------
    lane_i = lax.broadcasted_iota(jnp.int32, (1, P), 1)      # prior idx (lanes)
    eye = (lax.broadcasted_iota(jnp.int32, (rank_strip, rank_strip), 0) ==
           lax.broadcasted_iota(jnp.int32, (rank_strip, rank_strip), 1))
    ones_row = jnp.ones((1, rank_strip), jnp.bfloat16)        # hoisted

    def strip_body(s, rank):
        j0 = pl.multiple_of(s * rank_strip, rank_strip)
        l_strip = l_scr[:, pl.ds(j0, rank_strip)]             # (1, Tj)
        # lanes -> sublanes: eye-masked lane reduce (exact copy: x + 0s == x).
        l_s = jnp.sum(
            jnp.where(eye,
                      jnp.broadcast_to(l_strip, (rank_strip, rank_strip)),
                      0.0),
            axis=1, keepdims=True)                            # (Tj, 1)
        j_idx = j0 + lax.broadcasted_iota(jnp.int32, (rank_strip, 1), 0)
        # Fused rank mask: l_j beats l_i strictly, or ties with lower index.
        # Single-source l => diagonal is automatically excluded (== and j<i).
        win = jnp.logical_or(l_s > l_row,
                             jnp.logical_and(l_s == l_row, j_idx < lane_i))
        # Sublane reduce on the otherwise-idle MXU; counts <= 128 exact in bf16.
        return rank + jnp.dot(ones_row, win.astype(jnp.bfloat16),
                              preferred_element_type=jnp.float32)

    rank = lax.fori_loop(0, n_strips, strip_body,
                         jnp.zeros((1, P), jnp.float32),
                         unroll=min(2, n_strips))             # (1, P)

    num_neg = jnp.minimum(jnp.float32(negpos_ratio) * num_pos,
                          jnp.float32(num_priors_real - 1))   # (1, 1)
    neg = jnp.logical_and(rank < num_neg, valid)              # (1, P)
    sel = jnp.logical_or(pos_row, neg)
    loss_c = jnp.sum(jnp.where(sel, ce_row, 0.0), axis=(0, 1), keepdims=True)

    loss_l_ref[...] = loss_l
    loss_c_ref[...] = loss_c
    npos_ref[...] = num_pos


# ----------------------------------------------------------------------------
# JAX glue: SSD matching (jaccard + encode) — data-dependent scatter, kept
# outside the kernel.
# ----------------------------------------------------------------------------
def point_form(boxes):
    return jnp.concatenate(
        [boxes[:, :2] - boxes[:, 2:] / 2.0,
         boxes[:, :2] + boxes[:, 2:] / 2.0], axis=1)


def jaccard(box_a, box_b):
    max_xy = jnp.minimum(box_a[:, None, 2:], box_b[None, :, 2:])
    min_xy = jnp.maximum(box_a[:, None, :2], box_b[None, :, :2])
    inter_wh = jnp.clip(max_xy - min_xy, 0.0)
    inter = inter_wh[..., 0] * inter_wh[..., 1]
    area_a = ((box_a[:, 2] - box_a[:, 0]) * (box_a[:, 3] - box_a[:, 1]))[:, None]
    area_b = ((box_b[:, 2] - box_b[:, 0]) * (box_b[:, 3] - box_b[:, 1]))[None, :]
    return inter / (area_a + area_b - inter)


def encode(matched, priors, variances):
    g_cxcy = (matched[:, :2] + matched[:, 2:]) / 2.0 - priors[:, :2]
    g_cxcy = g_cxcy / (variances[0] * priors[:, 2:])
    g_wh = (matched[:, 2:] - matched[:, :2]) / priors[:, 2:]
    g_wh = jnp.log(g_wh) / variances[1]
    return jnp.concatenate([g_cxcy, g_wh], axis=1)


def match(threshold, truths, priors, variances, labels):
    overlaps = jaccard(truths, point_form(priors))      # (num_obj, P)
    best_prior_idx = jnp.argmax(overlaps, axis=1)       # (num_obj,)
    best_truth_overlap = jnp.max(overlaps, axis=0)      # (P,)
    best_truth_idx = jnp.argmax(overlaps, axis=0)       # (P,)
    best_truth_overlap = best_truth_overlap.at[best_prior_idx].set(2.0)
    best_truth_idx = best_truth_idx.at[best_prior_idx].set(
        jnp.arange(truths.shape[0]))
    matches = truths[best_truth_idx]                    # (P, 4)
    conf = labels[best_truth_idx].astype(jnp.int32) + 1
    conf = jnp.where(best_truth_overlap < threshold, 0, conf)
    loc = encode(matches, priors, variances)
    return loc, conf


# ----------------------------------------------------------------------------
# Wrapper (the MultiBoxLoss.forward equivalent)
# ----------------------------------------------------------------------------
def multibox_loss(loc_data, conf_data, priors, targets, *,
                  num_classes, overlap_thresh=0.5, negpos_ratio=3,
                  variances=(0.1, 0.2), rank_strip=128):
    B, P, _ = loc_data.shape
    C = num_classes
    priors = priors[:P, :]
    truths = targets[..., :4]
    labels = targets[..., 4]

    loc_t, conf_t = jax.vmap(
        lambda t, l: match(overlap_thresh, t, priors, variances, l))(truths, labels)
    conf_t = conf_t.astype(jnp.int32)

    # Pad the prior axis up to a multiple of rank_strip (handles P=8732 etc.);
    # padded lanes get conf_t = -1 and are masked out of every term in-kernel.
    rank_strip = int(min(rank_strip, P))
    P_pad = -(-P // rank_strip) * rank_strip
    pad = P_pad - P
    if pad:
        loc_data = jnp.pad(loc_data, ((0, 0), (0, pad), (0, 0)))
        loc_t = jnp.pad(loc_t, ((0, 0), (0, pad), (0, 0)))
        conf_data = jnp.pad(conf_data, ((0, 0), (0, pad), (0, 0)))
        conf_t = jnp.pad(conf_t, ((0, 0), (0, pad)), constant_values=-1)

    # Lane-dense layout prep (cheap XLA transposes): priors on the lane axis.
    # TODO(synk): emit conf/loc already as (B, C, P) from the producing layers
    # to save this standalone HBM round trip of the conf tensor.
    loc_p_T = jnp.swapaxes(loc_data, 1, 2)                 # (B, 4, P_pad)
    loc_t_T = jnp.swapaxes(loc_t, 1, 2)                    # (B, 4, P_pad)
    conf_T = jnp.swapaxes(conf_data, 1, 2)                 # (B, C, P_pad)
    conf_t_row = conf_t[:, None, :]                        # (B, 1, P_pad)

    kernel = functools.partial(
        _multibox_loss_kernel, num_classes=C, num_priors_real=P,
        negpos_ratio=negpos_ratio, rank_strip=rank_strip)
    out_shape = (jax.ShapeDtypeStruct((B, 1, 1), jnp.float32),
                 jax.ShapeDtypeStruct((B, 1, 1), jnp.float32),
                 jax.ShapeDtypeStruct((B, 1, 1), jnp.float32))

    loss_l_b, loss_c_b, npos_b = pl.pallas_call(
        kernel,
        out_shape=out_shape,
        grid_spec=pltpu.PrefetchScalarGridSpec(
            num_scalar_prefetch=0,
            grid=(B,),  # batch is truly parallel; keep B even on v7x (2 TCs)
            in_specs=[
                pl.BlockSpec((pl.Squeezed(), 4, P_pad), lambda b: (b, 0, 0)),
                pl.BlockSpec((pl.Squeezed(), 4, P_pad), lambda b: (b, 0, 0)),
                pl.BlockSpec((pl.Squeezed(), C, P_pad), lambda b: (b, 0, 0)),
                pl.BlockSpec((pl.Squeezed(), 1, P_pad), lambda b: (b, 0, 0)),
            ],
            out_specs=[
                pl.BlockSpec((pl.Squeezed(), 1, 1), lambda b: (b, 0, 0)),
                pl.BlockSpec((pl.Squeezed(), 1, 1), lambda b: (b, 0, 0)),
                pl.BlockSpec((pl.Squeezed(), 1, 1), lambda b: (b, 0, 0)),
            ],
            scratch_shapes=[pltpu.VMEM((1, P_pad), jnp.float32)],
        ),
        compiler_params=pltpu.CompilerParams(
            dimension_semantics=("parallel",),
            vmem_limit_bytes=32 * 1024 * 1024),
    )(loc_p_T, loc_t_T, conf_T, conf_t_row)

    # The PyTorch original divides by raw N (NaN when there are no positives);
    # clamping to >= 1 is an intentional, documented guard.
    N = jnp.maximum(jnp.sum(npos_b), 1.0)
    return jnp.sum(loss_l_b) / N, jnp.sum(loss_c_b) / N


# ----------------------------------------------------------------------------
# Pure-JAX reference (same math, same stable-rank tie-break) for validation.
# ----------------------------------------------------------------------------
def multibox_loss_ref(loc_data, conf_data, priors, targets, *,
                      num_classes, overlap_thresh=0.5, negpos_ratio=3,
                      variances=(0.1, 0.2)):
    B, P, _ = loc_data.shape
    truths = targets[..., :4]
    labels = targets[..., 4]
    loc_t, conf_t = jax.vmap(
        lambda t, l: match(overlap_thresh, t, priors, variances, l))(truths, labels)

    pos = conf_t > 0                                      # (B, P)
    num_pos = pos.sum(axis=1)                             # (B,)
    d = loc_data - loc_t
    ad = jnp.abs(d)
    sl1 = jnp.where(ad < 1.0, 0.5 * d * d, ad - 0.5)
    loss_l = jnp.sum(sl1 * pos[..., None])

    m = conf_data.max(-1, keepdims=True)
    lse = m[..., 0] + jnp.log(jnp.exp(conf_data - m).sum(-1))
    gathered = jnp.take_along_axis(conf_data, conf_t[..., None], axis=-1)[..., 0]
    ce = lse - gathered                                   # (B, P)

    l = jnp.where(pos, 0.0, ce)
    gt = (l[:, None, :] > l[:, :, None]).astype(jnp.float32)
    eq = l[:, None, :] == l[:, :, None]
    idx = jnp.arange(P)
    tie = (eq & (idx[None, None, :] < idx[None, :, None])).astype(jnp.float32)
    rank = (gt + tie).sum(-1)
    num_neg = jnp.minimum(negpos_ratio * num_pos, P - 1)
    neg = rank < num_neg[:, None].astype(jnp.float32)
    sel = pos | neg
    loss_c = jnp.sum(ce * sel)

    N = num_pos.sum().astype(jnp.float32)
    return loss_l / N, loss_c / N


if __name__ == "__main__":
    key = jax.random.PRNGKey(0)
    B, P, C, G = 2, 128, 4, 3           # batch, priors, classes, gt boxes/img

    # Deterministic priors: 16x8 grid of centers, fixed size, (cx, cy, w, h).
    gx, gy = 16, 8
    cx = (jnp.arange(gx, dtype=jnp.float32) + 0.5) / gx
    cy = (jnp.arange(gy, dtype=jnp.float32) + 0.5) / gy
    cxx, cyy = jnp.meshgrid(cx, cy)
    wh = jnp.full((P,), 0.15, dtype=jnp.float32)
    priors = jnp.stack([cxx.ravel(), cyy.ravel(), wh, wh], axis=1)  # (P, 4)

    k1, k2, k3, k4, k5 = jax.random.split(key, 5)
    centers = jax.random.uniform(k1, (B, G, 2), minval=0.25, maxval=0.75)
    sizes = jax.random.uniform(k2, (B, G, 2), minval=0.15, maxval=0.35)
    labels = jax.random.randint(k3, (B, G), 0, C - 1).astype(jnp.float32)
    targets = jnp.concatenate(
        [centers - sizes / 2, centers + sizes / 2, labels[..., None]], axis=-1)

    loc_data = 0.1 * jax.random.normal(k4, (B, P, 4), dtype=jnp.float32)
    conf_data = jax.random.normal(k5, (B, P, C), dtype=jnp.float32)

    loss_l, loss_c = multibox_loss(
        loc_data, conf_data, priors, targets,
        num_classes=C, overlap_thresh=0.5, negpos_ratio=3)
    jax.block_until_ready((loss_l, loss_c))

    ref_l, ref_c = multibox_loss_ref(
        loc_data, conf_data, priors, targets,
        num_classes=C, overlap_thresh=0.5, negpos_ratio=3)
    assert jnp.allclose(loss_l, ref_l, rtol=1e-3, atol=1e-3), (loss_l, ref_l)
    assert jnp.allclose(loss_c, ref_c, rtol=1e-3, atol=1e-3), (loss_c, ref_c)

    print("KERNEL_OK")
</pallas_src>

<mosaic_0001>
module attributes {stable_mosaic.version = 11 : i64} {
  func.func @_multibox_loss_kernel(%arg0: i32, %arg1: memref<1x4x128xf32, #tpu.memory_space<vmem>>, %arg2: memref<1x4x128xf32, #tpu.memory_space<vmem>>, %arg3: memref<1x4x128xf32, #tpu.memory_space<vmem>>, %arg4: memref<1x1x128xi32, #tpu.memory_space<vmem>>, %arg5: memref<1x1x1xf32, #tpu.memory_space<vmem>>, %arg6: memref<1x1x1xf32, #tpu.memory_space<vmem>>, %arg7: memref<1x1x1xf32, #tpu.memory_space<vmem>>, %arg8: memref<1x128xf32, #tpu.memory_space<vmem>>) attributes {dimension_semantics = [#tpu.dimension_semantics<parallel>], iteration_bounds = array<i64: 2>, scalar_prefetch = 0 : i64, scratch_operands = 1 : i64, tpu.core_type = #tpu.core_type<tc>, window_params = [{transform_indices = @transform_0, window_bounds = array<i64: 1, 4, 128>}, {transform_indices = @transform_1, window_bounds = array<i64: 1, 4, 128>}, {transform_indices = @transform_2, window_bounds = array<i64: 1, 4, 128>}, {transform_indices = @transform_3, window_bounds = array<i64: 1, 1, 128>}, {transform_indices = @transform_4, window_bounds = array<i64: 1, 1, 1>}, {transform_indices = @transform_5, window_bounds = array<i64: 1, 1, 1>}, {transform_indices = @transform_6, window_bounds = array<i64: 1, 1, 1>}]} {
    %c0 = arith.constant 0 : index
    %c0_0 = arith.constant 0 : index
    %c0_1 = arith.constant 0 : index
    %0 = vector.load %arg4[%c0, %c0_0, %c0_1] : memref<1x1x128xi32, #tpu.memory_space<vmem>>, vector<1x1x128xi32>
    %1 = vector.shape_cast %0 : vector<1x1x128xi32> to vector<1x128xi32>
    %c0_i32 = arith.constant 0 : i32
    %2 = vector.broadcast %c0_i32 : i32 to vector<1x128xi32>
    %3 = arith.cmpi sge, %1, %2 : vector<1x128xi32>
    %c0_i32_2 = arith.constant 0 : i32
    %4 = vector.broadcast %c0_i32_2 : i32 to vector<1x128xi32>
    %5 = arith.cmpi sgt, %1, %4 : vector<1x128xi32>
    %6 = arith.extui %5 : vector<1x128xi1> to vector<1x128xi32>
    %7 = arith.sitofp %6 : vector<1x128xi32> to vector<1x128xf32>
    %8 = vector.shape_cast %7 : vector<1x128xf32> to vector<1x1x128xf32>
    %cst = arith.constant dense<0.000000e+00> : vector<1xf32>
    %9 = vector.multi_reduction <add>, %8, %cst [1, 2] : vector<1x1x128xf32> to vector<1xf32>
    %10 = vector.shape_cast %9 : vector<1xf32> to vector<1x1x1xf32>
    %11 = vector.extract %10[0, 0, 0] : f32 from vector<1x1x1xf32>
    %12 = vector.broadcast %11 : f32 to vector<1x1xf32>
    %c0_3 = arith.constant 0 : index
    %c0_4 = arith.constant 0 : index
    %c0_5 = arith.constant 0 : index
    %13 = vector.load %arg1[%c0_3, %c0_4, %c0_5] : memref<1x4x128xf32, #tpu.memory_space<vmem>>, vector<1x4x128xf32>
    %14 = vector.shape_cast %13 : vector<1x4x128xf32> to vector<4x128xf32>
    %c0_6 = arith.constant 0 : index
    %c0_7 = arith.constant 0 : index
    %c0_8 = arith.constant 0 : index
    %15 = vector.load %arg2[%c0_6, %c0_7, %c0_8] : memref<1x4x128xf32, #tpu.memory_space<vmem>>, vector<1x4x128xf32>
    %16 = vector.shape_cast %15 : vector<1x4x128xf32> to vector<4x128xf32>
    %17 = arith.subf %14, %16 : vector<4x128xf32>
    %18 = math.absf %17 : vector<4x128xf32>
    %cst_9 = arith.constant 1.000000e+00 : f32
    %19 = vector.broadcast %cst_9 : f32 to vector<4x128xf32>
    %20 = arith.cmpf olt, %18, %19 : vector<4x128xf32>
    %cst_10 = arith.constant 5.000000e-01 : f32
    %21 = vector.broadcast %cst_10 : f32 to vector<4x128xf32>
    %22 = arith.mulf %21, %17 : vector<4x128xf32>
    %23 = arith.mulf %22, %17 : vector<4x128xf32>
    %cst_11 = arith.constant 5.000000e-01 : f32
    %24 = vector.broadcast %cst_11 : f32 to vector<4x128xf32>
    %25 = arith.subf %18, %24 : vector<4x128xf32>
    %26 = arith.select %20, %23, %25 : vector<4x128xi1>, vector<4x128xf32>
    %27 = vector.broadcast %7 : vector<1x128xf32> to vector<4x128xf32>
    %28 = arith.mulf %26, %27 : vector<4x128xf32>
    %29 = vector.shape_cast %28 : vector<4x128xf32> to vector<1x4x128xf32>
    %cst_12 = arith.constant dense<0.000000e+00> : vector<1xf32>
    %30 = vector.multi_reduction <add>, %29, %cst_12 [1, 2] : vector<1x4x128xf32> to vector<1xf32>
    %31 = vector.shape_cast %30 : vector<1xf32> to vector<1x1x1xf32>
    %32 = vector.extract %31[0, 0, 0] : f32 from vector<1x1x1xf32>
    %33 = vector.broadcast %32 : f32 to vector<1x1xf32>
    %c0_13 = arith.constant 0 : index
    %c0_14 = arith.constant 0 : index
    %c0_15 = arith.constant 0 : index
    %34 = vector.load %arg3[%c0_13, %c0_14, %c0_15] : memref<1x4x128xf32, #tpu.memory_space<vmem>>, vector<1x4x128xf32>
    %35 = vector.shape_cast %34 : vector<1x4x128xf32> to vector<4x128xf32>
    %cst_16 = arith.constant dense<0xFF800000> : vector<128xf32>
    %36 = vector.multi_reduction <maximumf>, %35, %cst_16 [0] : vector<4x128xf32> to vector<128xf32>
    %37 = vector.shape_cast %36 : vector<128xf32> to vector<1x128xf32>
    %38 = vector.broadcast %37 : vector<1x128xf32> to vector<4x128xf32>
    %39 = arith.subf %35, %38 : vector<4x128xf32>
    %40 = math.exp %39 : vector<4x128xf32>
    %cst_17 = arith.constant dense<0.000000e+00> : vector<128xf32>
    %41 = vector.multi_reduction <add>, %40, %cst_17 [0] : vector<4x128xf32> to vector<128xf32>
    %42 = vector.shape_cast %41 : vector<128xf32> to vector<1x128xf32>
    %43 = math.log %42 : vector<1x128xf32>
    %44 = arith.addf %37, %43 : vector<1x128xf32>
    %45 = tpu.iota {dimensions = array<i32: 0>} : vector<4x128xi32>
    %46 = vector.broadcast %1 : vector<1x128xi32> to vector<4x128xi32>
    %47 = arith.cmpi eq, %45, %46 : vector<4x128xi32>
    %cst_18 = arith.constant 0.000000e+00 : f32
    %48 = vector.broadcast %cst_18 : f32 to vector<4x128xf32>
    %49 = arith.select %47, %35, %48 : vector<4x128xi1>, vector<4x128xf32>
    %cst_19 = arith.constant dense<0.000000e+00> : vector<128xf32>
    %50 = vector.multi_reduction <add>, %49, %cst_19 [0] : vector<4x128xf32> to vector<128xf32>
    %51 = vector.shape_cast %50 : vector<128xf32> to vector<1x128xf32>
    %52 = arith.subf %44, %51 : vector<1x128xf32>
    %cst_20 = arith.constant 0.000000e+00 : f32
    %53 = vector.broadcast %cst_20 : f32 to vector<1x128xf32>
    %54 = arith.select %3, %52, %53 : vector<1x128xi1>, vector<1x128xf32>
    %cst_21 = arith.constant 0.000000e+00 : f32
    %55 = vector.broadcast %cst_21 : f32 to vector<1x128xf32>
    %56 = arith.select %5, %55, %54 : vector<1x128xi1>, vector<1x128xf32>
    %cst_22 = arith.constant -1.000000e+30 : f32
    %57 = vector.broadcast %cst_22 : f32 to vector<1x128xf32>
    %58 = arith.select %3, %56, %57 : vector<1x128xi1>, vector<1x128xf32>
    %c0_23 = arith.constant 0 : index
    %c0_24 = arith.constant 0 : index
    %59 = vector.load %arg8[%c0_23, %c0_24] : memref<1x128xf32, #tpu.memory_space<vmem>>, vector<1x128xf32>
    tpu.vector_store %arg8[%c0_23, %c0_24], %58 {strides = array<i32>} : memref<1x128xf32, #tpu.memory_space<vmem>>, vector<1x128xf32>,
    %60 = tpu.iota {dimensions = array<i32: 1>} : vector<1x128xi32>
    %61 = tpu.iota {dimensions = array<i32: 0>} : vector<128x128xi32>
    %62 = tpu.iota {dimensions = array<i32: 1>} : vector<128x128xi32>
    %63 = arith.cmpi eq, %61, %62 : vector<128x128xi32>
    %cst_25 = arith.constant 1.000000e+00 : bf16
    %64 = vector.broadcast %cst_25 : bf16 to vector<1x128xbf16>
    %cst_26 = arith.constant 0.000000e+00 : f32
    %65 = vector.broadcast %cst_26 : f32 to vector<1x128xf32>
    %c0_i32_27 = arith.constant 0 : i32
    %c128_i32 = arith.constant 128 : i32
    %66 = arith.muli %c0_i32_27, %c128_i32 : i32
    %67 = tpu.assume_multiple %66, 128 : i32
    %c0_28 = arith.constant 0 : index
    %68 = arith.index_cast %67 : i32 to index
    %69 = vector.load %arg8[%c0_28, %68] : memref<1x128xf32, #tpu.memory_space<vmem>>, vector<1x128xf32>
    %70 = vector.shape_cast %69 : vector<1x128xf32> to vector<1x128xf32>
    %71 = vector.broadcast %70 : vector<1x128xf32> to vector<128x128xf32>
    %cst_29 = arith.constant 0.000000e+00 : f32
    %72 = vector.broadcast %cst_29 : f32 to vector<128x128xf32>
    %73 = arith.select %63, %71, %72 : vector<128x128xi1>, vector<128x128xf32>
    %cst_30 = arith.constant dense<0.000000e+00> : vector<128xf32>
    %74 = vector.multi_reduction <add>, %73, %cst_30 [1] : vector<128x128xf32> to vector<128xf32>
    %75 = vector.shape_cast %74 : vector<128xf32> to vector<128x1xf32>
    %76 = tpu.iota {dimensions = array<i32: 0>} : vector<128x1xi32>
    %77 = vector.broadcast %67 : i32 to vector<128x1xi32>
    %78 = arith.addi %77, %76 : vector<128x1xi32>
    %79 = vector.broadcast %75 : vector<128x1xf32> to vector<128x128xf32>
    %80 = vector.broadcast %58 : vector<1x128xf32> to vector<128x128xf32>
    %81 = arith.cmpf ogt, %79, %80 : vector<128x128xf32>
    %82 = vector.broadcast %75 : vector<128x1xf32> to vector<128x128xf32>
    %83 = vector.broadcast %58 : vector<1x128xf32> to vector<128x128xf32>
    %84 = arith.cmpf oeq, %82, %83 : vector<128x128xf32>
    %85 = vector.broadcast %78 : vector<128x1xi32> to vector<128x128xi32>
    %86 = vector.broadcast %60 : vector<1x128xi32> to vector<128x128xi32>
    %87 = arith.cmpi slt, %85, %86 : vector<128x128xi32>
    %88 = arith.andi %84, %87 : vector<128x128xi1>
    %89 = arith.ori %81, %88 : vector<128x128xi1>
    %90 = arith.extui %89 : vector<128x128xi1> to vector<128x128xi32>
    %91 = arith.sitofp %90 : vector<128x128xi32> to vector<128x128xf32>
    %92 = arith.truncf %91 : vector<128x128xf32> to vector<128x128xbf16>
    %cst_31 = arith.constant dense<0.000000e+00> : vector<1x128xf32>
    %93 = tpu.matmul %64, %92, %cst_31 {dimension_numbers = #tpu.dot_dimension_numbers<[1], [0], [0], [1], [0, 0, 1, 1], [], []>} : vector<1x128xbf16>, vector<128x128xbf16>, vector<1x128xf32> -> vector<1x128xf32>
    %94 = arith.addf %65, %93 : vector<1x128xf32>
    %c1_i32 = arith.constant 1 : i32
    %cst_32 = arith.constant 3.000000e+00 : f32
    %95 = vector.broadcast %cst_32 : f32 to vector<1x1xf32>
    %96 = arith.mulf %95, %12 : vector<1x1xf32>
    %cst_33 = arith.constant 1.270000e+02 : f32
    %97 = vector.broadcast %cst_33 : f32 to vector<1x1xf32>
    %98 = arith.minimumf %96, %97 : vector<1x1xf32>
    %99 = vector.broadcast %98 : vector<1x1xf32> to vector<1x128xf32>
    %100 = arith.cmpf olt, %94, %99 : vector<1x128xf32>
    %101 = arith.andi %100, %3 : vector<1x128xi1>
    %102 = arith.ori %5, %101 : vector<1x128xi1>
    %cst_34 = arith.constant 0.000000e+00 : f32
    %103 = vector.broadcast %cst_34 : f32 to vector<1x128xf32>
    %104 = arith.select %102, %54, %103 : vector<1x128xi1>, vector<1x128xf32>
    %105 = vector.shape_cast %104 : vector<1x128xf32> to vector<1x1x128xf32>
    %cst_35 = arith.constant dense<0.000000e+00> : vector<1xf32>
    %106 = vector.multi_reduction <add>, %105, %cst_35 [1, 2] : vector<1x1x128xf32> to vector<1xf32>
    %107 = vector.shape_cast %106 : vector<1xf32> to vector<1x1x1xf32>
    %108 = vector.extract %107[0, 0, 0] : f32 from vector<1x1x1xf32>
    %109 = vector.broadcast %108 : f32 to vector<1x1xf32>
    %c0_36 = arith.constant 0 : index
    %c0_37 = arith.constant 0 : index
    %c0_38 = arith.constant 0 : index
    %110 = vector.load %arg5[%c0_36, %c0_37, %c0_38] : memref<1x1x1xf32, #tpu.memory_space<vmem>>, vector<1x1x1xf32>
    %111 = vector.shape_cast %110 : vector<1x1x1xf32> to vector<1x1xf32>
    %112 = vector.shape_cast %33 : vector<1x1xf32> to vector<1x1x1xf32>
    tpu.vector_store %arg5[%c0_36, %c0_37, %c0_38], %112 {strides = array<i32>} : memref<1x1x1xf32, #tpu.memory_space<vmem>>, vector<1x1x1xf32>,
    %c0_39 = arith.constant 0 : index
    %c0_40 = arith.constant 0 : index
    %c0_41 = arith.constant 0 : index
    %113 = vector.load %arg6[%c0_39, %c0_40, %c0_41] : memref<1x1x1xf32, #tpu.memory_space<vmem>>, vector<1x1x1xf32>
    %114 = vector.shape_cast %113 : vector<1x1x1xf32> to vector<1x1xf32>
    %115 = vector.shape_cast %109 : vector<1x1xf32> to vector<1x1x1xf32>
    tpu.vector_store %arg6[%c0_39, %c0_40, %c0_41], %115 {strides = array<i32>} : memref<1x1x1xf32, #tpu.memory_space<vmem>>, vector<1x1x1xf32>,
    %c0_42 = arith.constant 0 : index
    %c0_43 = arith.constant 0 : index
    %c0_44 = arith.constant 0 : index
    %116 = vector.load %arg7[%c0_42, %c0_43, %c0_44] : memref<1x1x1xf32, #tpu.memory_space<vmem>>, vector<1x1x1xf32>
    %117 = vector.shape_cast %116 : vector<1x1x1xf32> to vector<1x1xf32>
    %118 = vector.shape_cast %12 : vector<1x1xf32> to vector<1x1x1xf32>
    tpu.vector_store %arg7[%c0_42, %c0_43, %c0_44], %118 {strides = array<i32>} : memref<1x1x1xf32, #tpu.memory_space<vmem>>, vector<1x1x1xf32>,
    return
  }
  func.func @transform_0(%arg0: i32) -> (i32, i32, i32) {
    %c0_i32 = arith.constant 0 : i32
    %c0_i32_0 = arith.constant 0 : i32
    %c0_i32_1 = arith.constant 0 : i32
    return %arg0, %c0_i32, %c0_i32_0 : i32, i32, i32
  }
  func.func @transform_1(%arg0: i32) -> (i32, i32, i32) {
    %c0_i32 = arith.constant 0 : i32
    %c0_i32_0 = arith.constant 0 : i32
    %c0_i32_1 = arith.constant 0 : i32
    return %arg0, %c0_i32, %c0_i32_0 : i32, i32, i32
  }
  func.func @transform_2(%arg0: i32) -> (i32, i32, i32) {
    %c0_i32 = arith.constant 0 : i32
    %c0_i32_0 = arith.constant 0 : i32
    %c0_i32_1 = arith.constant 0 : i32
    return %arg0, %c0_i32, %c0_i32_0 : i32, i32, i32
  }
  func.func @transform_3(%arg0: i32) -> (i32, i32, i32) {
    %c0_i32 = arith.constant 0 : i32
    %c0_i32_0 = arith.constant 0 : i32
    %c0_i32_1 = arith.constant 0 : i32
    return %arg0, %c0_i32, %c0_i32_0 : i32, i32, i32
  }
  func.func @transform_4(%arg0: i32) -> (i32, i32, i32) {
    %c0_i32 = arith.constant 0 : i32
    %c0_i32_0 = arith.constant 0 : i32
    %c0_i32_1 = arith.constant 0 : i32
    return %arg0, %c0_i32, %c0_i32_0 : i32, i32, i32
  }
  func.func @transform_5(%arg0: i32) -> (i32, i32, i32) {
    %c0_i32 = arith.constant 0 : i32
    %c0_i32_0 = arith.constant 0 : i32
    %c0_i32_1 = arith.constant 0 : i32
    return %arg0, %c0_i32, %c0_i32_0 : i32, i32, i32
  }
  func.func @transform_6(%arg0: i32) -> (i32, i32, i32) {
    %c0_i32 = arith.constant 0 : i32
    %c0_i32_0 = arith.constant 0 : i32
    %c0_i32_1 = arith.constant 0 : i32
    return %arg0, %c0_i32, %c0_i32_0 : i32, i32, i32
  }
}

</mosaic_0001>

<llo_original>
// kernel: tpu_custom_call.1
$region0: #{tpu_custom_call.1}
  #allocation0 [shape = 'u32[]', space=smem, size = 0x4, offset = 0x4, fixed_abs, tag = 'smem constant byte address 0x4 - core index']
  #allocation1 [shape = 'u32[72,128]{1,0:T(1,128)}', space=vmem, size = 0x9000, scoped, tag = 'internal scratch']
  #allocation2 [shape = 'f32[1,128]{1,0:T(1,128)}', space=vmem, size = 0x200, scoped, tag = 'scratch operand']
  %s0 = inlined_call_operand.hbm [shape: f32[2,4,128], index: 0, kind: input, shape index: {}]
  %s1 = inlined_call_operand.hbm [shape: f32[2,4,128], index: 1, kind: input, shape index: {}]
  %s2 = inlined_call_operand.hbm [shape: f32[2,4,128], index: 2, kind: input, shape index: {}]
  %s3 = inlined_call_operand.vmem [shape: s32[2,1,128], index: 3, kind: input, shape index: {}]
  %s4 = inlined_call_operand.vmem [shape: f32[2,1,1], index: 4, kind: output, shape index: {0}]
  %s5 = inlined_call_operand.vmem [shape: f32[2,1,1], index: 5, kind: output, shape index: {1}]
  %s6 = inlined_call_operand.vmem [shape: f32[2,1,1], index: 6, kind: output, shape index: {2}]
  %7 = xla_tuple %s4, %s5, %s6
  %s8 = sld [smem:[#allocation0]]
  $region77: #{tpu_custom_call.1} parent=0
    _
  %s10 = ssub.s32 1, %s8
  %s11 = scalar_select 0, %s10, %s8
  $region1: #{tpu_custom_call.1} parent=0
    #allocation3 [shape = 'u8[4096]{0}', space=vmem, size = 0x1000, scoped, tag = 'input window, operand 0']
    #allocation4 [shape = 's32[2]{0}', space=sflag, size = 0x8, scoped, tag = 'scoped memory for tpu_custom_call.1']
    #allocation5 [shape = 'u8[4096]{0}', space=vmem, size = 0x1000, scoped, tag = 'input window, operand 1']
    #allocation6 [shape = 's32[2]{0}', space=sflag, size = 0x8, scoped, tag = 'scoped memory for tpu_custom_call.1']
    #allocation7 [shape = 'u8[4096]{0}', space=vmem, size = 0x1000, scoped, tag = 'input window, operand 2']
    %12 = vsyncpa [#allocation4], 0
    %s13 = scalar_lea.sflag [#allocation4], 1
    %14 = vsyncpa %s13, 0
    %15 = vsyncpa [#allocation6], 0
    %s16 = scalar_lea.sflag [#allocation6], 1
    %17 = vsyncpa %s16, 0
    loop: start=0, step=1, limit=4
    $region2: #{tpu_custom_call.1} parent=1 // loop_pre_header
      _
    $region3: #{tpu_custom_call.1} parent=1 // loop_header
      %s19 = sphi 0, %s23
      %p20 = scmp.ge.s32.totalorder %s19, 4
      %s29 = sphi 0, %s31
      %s32 = sphi 0, %s29
      %s33 = sphi 0, %s32
      %s49 = sphi 0, %s33
      %s55 = sphi 0, %s57
      %s58 = sphi 0, %s55
      %s59 = sphi 0, %s58
      %s75 = sphi 0, %s59
      %s81 = sphi 0, %s83
      %s84 = sphi 0, %s81
      %s85 = sphi 0, %s84
      %s101 = sphi 0, %s85
      %s107 = sphi 0, %s109
      %s110 = sphi 0, %s107
      %s111 = sphi 0, %s110
      %s127 = sphi 0, %s111
      %s133 = sphi 0, %s135
      %s136 = sphi 0, %s133
      %s137 = sphi 0, %s136
      %s153 = sphi 0, %s137
      %s159 = sphi 0, %s161
      %s162 = sphi 0, %s159
      %s163 = sphi 0, %s162
      %s179 = sphi 0, %s163
      %s185 = sphi 0, %s187
      %s188 = sphi 0, %s185
      %s189 = sphi 0, %s188
      %s205 = sphi 0, %s189
    $region4: #{tpu_custom_call.1} parent=1 // loop_header_branch
      %22 = sbr.rel (%p20) target = $region8
    $region5: #{tpu_custom_call.1} parent=1 // loop_body
      %s24 = ssub.s32 %s19, 1
      %s25 = ssub.s32 %s19, 2
      %s26 = sadd.s32 %s19, 1
      %s27 = ssub.s32 %s19, %s26
      %p28 = scmp.eq.s32.totalorder %s27, 0
      %s30 = sadd.s32 %s29, 1
      %s31 = scalar_select %p28, %s29, %s30
      %p34 = pneg %p28
      %p35 = scmp.eq.s32.totalorder %s19, 1
      %p36 = por %p34, %p35
      %p37 = scmp.ne.s32.totalorder %s29, %s32
      %p38 = scmp.eq.s32.totalorder %s19, 0
      %p39 = por %p37, %p38
      %p40 = scmp.ne.s32.totalorder %s29, %s32
      %p41 = scmp.eq.s32.totalorder %s24, 1
      %p42 = por %p40, %p41
      %p43 = scmp.ne.s32.totalorder %s32, %s33
      %p44 = scmp.eq.s32.totalorder %s24, 0
      %p45 = por %p43, %p44
      %p46 = scmp.ne.s32.totalorder %s32, %s33
      %p47 = scmp.eq.s32.totalorder %s25, 1
      %p48 = por %p46, %p47
      %p50 = scmp.ne.s32.totalorder %s33, %s49
      %p51 = scmp.eq.s32.totalorder %s25, 0
      %p52 = por %p50, %p51
      %s53 = ssub.s32 %s19, %s26
      %p54 = scmp.eq.s32.totalorder %s53, 0
      %s56 = sadd.s32 %s55, 1
      %s57 = scalar_select %p54, %s55, %s56
      %p60 = pneg %p54
      %p61 = scmp.eq.s32.totalorder %s19, 1
      %p62 = por %p60, %p61
      %p63 = scmp.ne.s32.totalorder %s55, %s58
      %p64 = scmp.eq.s32.totalorder %s19, 0
      %p65 = por %p63, %p64
      %p66 = scmp.ne.s32.totalorder %s55, %s58
      %p67 = scmp.eq.s32.totalorder %s24, 1
      %p68 = por %p66, %p67
      %p69 = scmp.ne.s32.totalorder %s58, %s59
      %p70 = scmp.eq.s32.totalorder %s24, 0
      %p71 = por %p69, %p70
      %p72 = scmp.ne.s32.totalorder %s58, %s59
      %p73 = scmp.eq.s32.totalorder %s25, 1
      %p74 = por %p72, %p73
      %p76 = scmp.ne.s32.totalorder %s59, %s75
      %p77 = scmp.eq.s32.totalorder %s25, 0
      %p78 = por %p76, %p77
      %s79 = ssub.s32 %s19, %s26
      %p80 = scmp.eq.s32.totalorder %s79, 0
      %s82 = sadd.s32 %s81, 1
      %s83 = scalar_select %p80, %s81, %s82
      %p86 = pneg %p80
      %p87 = scmp.eq.s32.totalorder %s19, 1
      %p88 = por %p86, %p87
      %p89 = scmp.ne.s32.totalorder %s81, %s84
      %p90 = scmp.eq.s32.totalorder %s19, 0
      %p91 = por %p89, %p90
      %p92 = scmp.ne.s32.totalorder %s81, %s84
      %p93 = scmp.eq.s32.totalorder %s24, 1
      %p94 = por %p92, %p93
      %p95 = scmp.ne.s32.totalorder %s84, %s85
      %p96 = scmp.eq.s32.totalorder %s24, 0
      %p97 = por %p95, %p96
      %p98 = scmp.ne.s32.totalorder %s84, %s85
      %p99 = scmp.eq.s32.totalorder %s25, 1
      %p100 = por %p98, %p99
      %p102 = scmp.ne.s32.totalorder %s85, %s101
      %p103 = scmp.eq.s32.totalorder %s25, 0
      %p104 = por %p102, %p103
      %s105 = ssub.s32 %s19, %s26
      %p106 = scmp.eq.s32.totalorder %s105, 0
      %s108 = sadd.s32 %s107, 1
      %s109 = scalar_select %p106, %s107, %s108
      %p112 = pneg %p106
      %p113 = scmp.eq.s32.totalorder %s19, 1
      %p114 = por %p112, %p113
      %p115 = scmp.ne.s32.totalorder %s107, %s110
      %p116 = scmp.eq.s32.totalorder %s19, 0
      %p117 = por %p115, %p116
      %p118 = scmp.ne.s32.totalorder %s107, %s110
      %p119 = scmp.eq.s32.totalorder %s24, 1
      %p120 = por %p118, %p119
      %p121 = scmp.ne.s32.totalorder %s110, %s111
      %p122 = scmp.eq.s32.totalorder %s24, 0
      %p123 = por %p121, %p122
      %p124 = scmp.ne.s32.totalorder %s110, %s111
      %p125 = scmp.eq.s32.totalorder %s25, 1
      %p126 = por %p124, %p125
      %p128 = scmp.ne.s32.totalorder %s111, %s127
      %p129 = scmp.eq.s32.totalorder %s25, 0
      %p130 = por %p128, %p129
      %s131 = ssub.s32 %s19, %s26
      %p132 = scmp.eq.s32.totalorder %s131, 0
      %s134 = sadd.s32 %s133, 1
      %s135 = scalar_select %p132, %s133, %s134
      %p138 = pneg %p132
      %p139 = scmp.eq.s32.totalorder %s19, 1
      %p140 = por %p138, %p139
      %p141 = scmp.ne.s32.totalorder %s133, %s136
      %p142 = scmp.eq.s32.totalorder %s19, 0
      %p143 = por %p141, %p142
      %p144 = scmp.ne.s32.totalorder %s133, %s136
      %p145 = scmp.eq.s32.totalorder %s24, 1
      %p146 = por %p144, %p145
      %p147 = scmp.ne.s32.totalorder %s136, %s137
      %p148 = scmp.eq.s32.totalorder %s24, 0
      %p149 = por %p147, %p148
      %p150 = scmp.ne.s32.totalorder %s136, %s137
      %p151 = scmp.eq.s32.totalorder %s25, 1
      %p152 = por %p150, %p151
      %p154 = scmp.ne.s32.totalorder %s137, %s153
      %p155 = scmp.eq.s32.totalorder %s25, 0
      %p156 = por %p154, %p155
      %s157 = ssub.s32 %s19, %s26
      %p158 = scmp.eq.s32.totalorder %s157, 0
      %s160 = sadd.s32 %s159, 1
      %s161 = scalar_select %p158, %s159, %s160
      %p164 = pneg %p158
      %p165 = scmp.eq.s32.totalorder %s19, 1
      %p166 = por %p164, %p165
      %p167 = scmp.ne.s32.totalorder %s159, %s162
      %p168 = scmp.eq.s32.totalorder %s19, 0
      %p169 = por %p167, %p168
      %p170 = scmp.ne.s32.totalorder %s159, %s162
      %p171 = scmp.eq.s32.totalorder %s24, 1
      %p172 = por %p170, %p171
      %p173 = scmp.ne.s32.totalorder %s162, %s163
      %p174 = scmp.eq.s32.totalorder %s24, 0
      %p175 = por %p173, %p174
      %p176 = scmp.ne.s32.totalorder %s162, %s163
      %p177 = scmp.eq.s32.totalorder %s25, 1
      %p178 = por %p176, %p177
      %p180 = scmp.ne.s32.totalorder %s163, %s179
      %p181 = scmp.eq.s32.totalorder %s25, 0
      %p182 = por %p180, %p181
      %s183 = ssub.s32 %s19, %s26
      %p184 = scmp.eq.s32.totalorder %s183, 0
      %s186 = sadd.s32 %s185, 1
      %s187 = scalar_select %p184, %s185, %s186
      %p190 = pneg %p184
      %p191 = scmp.eq.s32.totalorder %s19, 1
      %p192 = por %p190, %p191
      %p193 = scmp.ne.s32.totalorder %s185, %s188
      %p194 = scmp.eq.s32.totalorder %s19, 0
      %p195 = por %p193, %p194
      %p196 = scmp.ne.s32.totalorder %s185, %s188
      %p197 = scmp.eq.s32.totalorder %s24, 1
      %p198 = por %p196, %p197
      %p199 = scmp.ne.s32.totalorder %s188, %s189
      %p200 = scmp.eq.s32.totalorder %s24, 0
      %p201 = por %p199, %p200
      %p202 = scmp.ne.s32.totalorder %s188, %s189
      %p203 = scmp.eq.s32.totalorder %s25, 1
      %p204 = por %p202, %p203
      %p206 = scmp.ne.s32.totalorder %s189, %s205
      %p207 = scmp.eq.s32.totalorder %s25, 0
      %p208 = por %p206, %p207
      %p209 = scmp.le.s32.totalorder 1, %s19
      %p210 = scmp.lt.s32.totalorder %s19, 3
      %p211 = pnand %p209, %p210
      %p212 = pneg %p211
      // Predicated region
      $region9: #{tpu_custom_call.1} parent=5 // pred_check
        _
      $region10: #{tpu_custom_call.1} parent=5 // pred_check_branch
        %214 = sbr.rel (%p211) target = $region12
      $region11: #{tpu_custom_call.1} parent=5 // pred_region
        %s215 = ssub.s32 %s19, 1
      $region12: #{tpu_custom_call.1} parent=5 // pred_fallthru
        _
      %p216 = scmp.lt.s32.totalorder %s19, 2
      // Predicated region
      $region13: #{tpu_custom_call.1} parent=5 // pred_check
        %p217 = pneg %p216
      $region14: #{tpu_custom_call.1} parent=5 // pred_check_branch
        %219 = sbr.rel (%p217) target = $region16
      $region15: #{tpu_custom_call.1} parent=5 // pred_region
        // Predicated region
        $region17: #{tpu_custom_call.1} parent=15 // pred_check
          %p220 = pneg %p39
        $region18: #{tpu_custom_call.1} parent=15 // pred_check_branch
          %222 = sbr.rel (%p220) target = $region20
        $region19: #{tpu_custom_call.1} parent=15 // pred_region
          %s223 = sand.u32 %s29, 1
          %s224 = scalar_lea.sflag [#allocation4], %s223
          %s225 = sand.u32 %s29, 1
          %s226 = smul.addr %s225, 4
          %s227 = scalar_lea.vmem [#allocation3], %s226
          %229 = vsyncadd %s224, 0
          %s230 = smul.addr %s19, 4
          %s231 = scalar_lea.hbm %s0, %s230
          %s233 = sshll.u32 %s231, 4
          %s234 = int_to_ptr.hbm [resolvable:$true] %s233
          %s235 = sshll.u32 %s227, 4
          %s236 = int_to_ptr.vmem [resolvable:$true] %s235
          %238 = dma.hbm_to_vmem [thread:$0]  %s234, 64, %s236, %s224
        $region20: #{tpu_custom_call.1} parent=15 // pred_fallthru
          _
        // Predicated region
        $region21: #{tpu_custom_call.1} parent=15 // pred_check
          %p239 = pneg %p65
        $region22: #{tpu_custom_call.1} parent=15 // pred_check_branch
          %241 = sbr.rel (%p239) target = $region24
        $region23: #{tpu_custom_call.1} parent=15 // pred_region
          %s242 = sand.u32 %s19, 1
          %s243 = scalar_lea.sflag [#allocation6], %s242
          %s244 = sand.u32 %s55, 1
          %s245 = smul.addr %s244, 4
          %s246 = scalar_lea.vmem [#allocation5], %s245
          %248 = vsyncadd %s243, 0
          %s249 = smul.addr %s19, 4
          %s250 = scalar_lea.hbm %s1, %s249
          %s252 = sshll.u32 %s250, 4
          %s253 = int_to_ptr.hbm [resolvable:$true] %s252
          %s254 = sshll.u32 %s246, 4
          %s255 = int_to_ptr.vmem [resolvable:$true] %s254
          %257 = dma.hbm_to_vmem [thread:$0]  %s253, 64, %s255, %s243
        $region24: #{tpu_custom_call.1} parent=15 // pred_fallthru
          _
        // Predicated region
        $region25: #{tpu_custom_call.1} parent=15 // pred_check
          %p258 = pneg %p91
        $region26: #{tpu_custom_call.1} parent=15 // pred_check_branch
          %260 = sbr.rel (%p258) target = $region28
        $region27: #{tpu_custom_call.1} parent=15 // pred_region
          %s261 = sand.u32 %s19, 1
          %s262 = scalar_lea.sflag [#allocation6], %s261
          %s263 = sand.u32 %s81, 1
          %s264 = smul.addr %s263, 4
          %s265 = scalar_lea.vmem [#allocation7], %s264
          %267 = vsyncadd %s262, 0
          %s268 = smul.addr %s19, 4
          %s269 = scalar_lea.hbm %s2, %s268
          %s271 = sshll.u32 %s269, 4
          %s272 = int_to_ptr.hbm [resolvable:$true] %s271
          %s273 = sshll.u32 %s265, 4
          %s274 = int_to_ptr.vmem [resolvable:$true] %s273
          %276 = dma.hbm_to_vmem [thread:$0]  %s272, 64, %s274, %s262
        $region28: #{tpu_custom_call.1} parent=15 // pred_fallthru
          _
        // Predicated region
        $region29: #{tpu_custom_call.1} parent=15 // pred_check
          %p277 = pneg %p117
        $region30: #{tpu_custom_call.1} parent=15 // pred_check_branch
          %279 = sbr.rel (%p277) target = $region32
        $region31: #{tpu_custom_call.1} parent=15 // pred_region
          %p280 = scmp.lt.s32.totalorder %s19, 1
          %s281 = scalar_select %p280, %s19, 1
          %s282 = scalar_lea.vmem %s3, %s281
        $region32: #{tpu_custom_call.1} parent=15 // pred_fallthru
          _
      $region16: #{tpu_custom_call.1} parent=5 // pred_fallthru
        _
      %p283 = scmp.le.s32.totalorder 1, %s19
      %p284 = scmp.lt.s32.totalorder %s19, 3
      %p285 = pnand %p283, %p284
      %p286 = pneg %p285
      // Predicated region
      $region33: #{tpu_custom_call.1} parent=5 // pred_check
        _
      $region34: #{tpu_custom_call.1} parent=5 // pred_check_branch
        %288 = sbr.rel (%p285) target = $region36
      $region35: #{tpu_custom_call.1} parent=5 // pred_region
        %s289 = ssub.s32 %s19, 1
        %s290 = sand.u32 %s32, 1
        %s291 = scalar_lea.sflag [#allocation4], %s290
        %s292 = sand.u32 %s32, 1
        %s293 = smul.addr %s292, 4
        %s294 = scalar_lea.vmem [#allocation3], %s293
        // Predicated region
        $region37: #{tpu_custom_call.1} parent=35 // pred_check
          %p295 = pneg %p45
        $region38: #{tpu_custom_call.1} parent=35 // pred_check_branch
          %297 = sbr.rel (%p295) target = $region40
        $region39: #{tpu_custom_call.1} parent=35 // pred_region
          %299 = dma.done %s291, 64
        $region40: #{tpu_custom_call.1} parent=35 // pred_fallthru
          _
        %s300 = sand.u32 %s24, 1
        %s301 = scalar_lea.sflag [#allocation6], %s300
        %s302 = sand.u32 %s58, 1
        %s303 = smul.addr %s302, 4
        %s304 = scalar_lea.vmem [#allocation5], %s303
        // Predicated region
        $region41: #{tpu_custom_call.1} parent=35 // pred_check
          %p305 = pneg %p71
        $region42: #{tpu_custom_call.1} parent=35 // pred_check_branch
          %307 = sbr.rel (%p305) target = $region44
        $region43: #{tpu_custom_call.1} parent=35 // pred_region
          %309 = dma.done %s301, 64
        $region44: #{tpu_custom_call.1} parent=35 // pred_fallthru
          _
        %s310 = sand.u32 %s24, 1
        %s311 = scalar_lea.sflag [#allocation6], %s310
        %s312 = sand.u32 %s84, 1
        %s313 = smul.addr %s312, 4
        %s314 = scalar_lea.vmem [#allocation7], %s313
        // Predicated region
        $region45: #{tpu_custom_call.1} parent=35 // pred_check
          %p315 = pneg %p97
        $region46: #{tpu_custom_call.1} parent=35 // pred_check_branch
          %317 = sbr.rel (%p315) target = $region48
        $region47: #{tpu_custom_call.1} parent=35 // pred_region
          %319 = dma.done %s311, 64
        $region48: #{tpu_custom_call.1} parent=35 // pred_fallthru
          _
        %s320 = sand.u32 %s32, 1
        %s321 = scalar_lea.sflag [#allocation4], %s320
        %s322 = sand.u32 %s32, 1
        %s323 = smul.addr %s322, 4
        %s324 = scalar_lea.vmem [#allocation3], %s323
        %p325 = pneg %p45
        %p326 = pneg %p42
        %s327 = sand.u32 %s24, 1
        %s328 = scalar_lea.sflag [#allocation6], %s327
        %s329 = sand.u32 %s58, 1
        %s330 = smul.addr %s329, 4
        %s331 = scalar_lea.vmem [#allocation5], %s330
        %p332 = pneg %p71
        %p333 = pneg %p68
        %s334 = sand.u32 %s24, 1
        %s335 = scalar_lea.sflag [#allocation6], %s334
        %s336 = sand.u32 %s84, 1
        %s337 = smul.addr %s336, 4
        %s338 = scalar_lea.vmem [#allocation7], %s337
        %p339 = pneg %p97
        %p340 = pneg %p94
        %p341 = scmp.lt.s32.totalorder %s24, 1
        %s342 = scalar_select %p341, %s24, 1
        %s343 = scalar_lea.vmem %s3, %s342
        %p344 = pneg %p123
        %p345 = pneg %p120
        %p346 = pneg %p149
        %p347 = pneg %p146
        %p348 = scmp.lt.s32.totalorder %s24, 1
        %s349 = scalar_select %p348, %s24, 1
        %s350 = scalar_lea.vmem %s4, %s349
        %p351 = pneg %p175
        %p352 = pneg %p172
        %p353 = scmp.lt.s32.totalorder %s24, 1
        %s354 = scalar_select %p353, %s24, 1
        %s355 = scalar_lea.vmem %s5, %s354
        %p356 = pneg %p201
        %p357 = pneg %p198
        %p358 = scmp.lt.s32.totalorder %s24, 1
        %s359 = scalar_select %p358, %s24, 1
        %s360 = scalar_lea.vmem %s6, %s359
        %p361 = scmp.lt.s32.totalorder %s24, 1
        %s362 = scalar_select %p361, %s24, 1
        %s363 = scalar_lea.vmem %s3, %s362
        %p364 = scmp.lt.s32.totalorder %s24, 1
        %s365 = scalar_select %p364, %s24, 1
        %s366 = scalar_lea.vmem %s4, %s365
        %p367 = scmp.lt.s32.totalorder %s24, 1
        %s368 = scalar_select %p367, %s24, 1
        %s369 = scalar_lea.vmem %s5, %s368
        %p370 = scmp.lt.s32.totalorder %s24, 1
        %s371 = scalar_select %p370, %s24, 1
        %s372 = scalar_lea.vmem %s6, %s371
        %v374 = vld [vmem:[%s363] sm:$0x1]
        %vm375 = vcmp.ge.s32.totalorder %v374, 0
        %vm376 = vcmp.gt.s32.totalorder %v374, 0
        %v377 = vsel %vm376, 1, 0
        %v378 = vcvt.s32.f32 %v377
        %vm379 = vcmask 1040384
        %v380 = vsel %vm379, %v378, 0.0
        %381 = vadd.xlane.f32.xlu0 %v380
        %v382 = vpop.xlane.xlu0 %381
        %v383 = vrot.slane %v382, 4
        %v384 = vadd.f32 %v382, %v383
        %v385 = vrot.slane %v384, 2
        %v386 = vadd.f32 %v384, %v385
        %v387 = vrot.slane %v386, 1
        %v388 = vadd.f32 %v386, %v387
        %s389 = vtos %v388
        %v390 = vstv %s389
        %v391 = vld [vmem:[%s294] sm:$0xf]
        %v392 = vld [vmem:[%s304] sm:$0xf]
        %v393 = vsub.f32 %v391, %v392
        %v394 = vand.u32 2147483647, %v393
        %vm395 = vcmp.lt.f32.partialorder %v394, 1.0
        %v396 = vmul.f32 %v393, 0.5
        %v397 = vmul.f32 %v396, %v393
        %v398 = vsub.f32 %v394, 0.5
        %v399 = vsel %vm395, %v397, %v398
        %v401 = vperm.slane %v378, 0
        %v403 = vmul.f32 %v399, %v401
        %vm404 = vcmask 1043456
        %v405 = vsel %vm404, %v403, 0.0
        %406 = vadd.xlane.f32.xlu0 %v405
        %v407 = vpop.xlane.xlu0 %406
        %v408 = vrot.slane %v407, 4
        %v409 = vadd.f32 %v407, %v408
        %v410 = vrot.slane %v409, 2
        %v411 = vadd.f32 %v409, %v410
        %v412 = vrot.slane %v411, 1
        %v413 = vadd.f32 %v411, %v412
        %s414 = vtos %v413
        %v415 = vld [vmem:[%s314] sm:$0xf]
        %v416 = vsel %vm404, %v415, -inf
        %v417 = vrot.slane %v416, 4
        %v418 = vmax.f32 %v416, %v417
        %v419 = vrot.slane %v418, 2
        %v420 = vmax.f32 %v418, %v419
        %v421 = vrot.slane %v420, 1
        %v422 = vmax.f32 %v420, %v421
        %v423 = vsub.f32 %v415, %v422
        %v424 = vmul.f32 %v423, 1.442695
        %v425 = vpow.pop %v424
        %v426 = vsel %vm404, %v425, 0.0
        %v427 = vrot.slane %v426, 4
        %v428 = vadd.f32 %v426, %v427
        %v429 = vrot.slane %v428, 2
        %v430 = vadd.f32 %v428, %v429
        %v431 = vrot.slane %v430, 1
        %v432 = vadd.f32 %v430, %v431
        %v433 = vlog2.pop %v432
        %v434 = vmul.f32 %v433, 0.6931472
        %v435 = vadd.f32 %v422, %v434
        %v436 = vlaneseq
        %v437 = vshrl.u32 %v436, 7
        %v438 = vperm.slane %v374, 0
        %vm439 = vcmp.eq.s32.totalorder %v437, %v438
        %v440 = vsel %vm439, %v415, 0.0
        %v441 = vsel %vm404, %v440, 0.0
        %v442 = vrot.slane %v441, 4
        %v443 = vadd.f32 %v441, %v442
        %v444 = vrot.slane %v443, 2
        %v445 = vadd.f32 %v443, %v444
        %v446 = vrot.slane %v445, 1
        %v447 = vadd.f32 %v445, %v446
        %v448 = vsub.f32 %v435, %v447
        %v449 = vsel %vm375, %v448, 0.0
        %v450 = vsel %vm376, 0.0, %v449
        %v451 = vsel %vm375, %v450, -1e+30
        %452 = vst [vmem:[#allocation2] sm:$0x1] %v451
        %v453 = vlaneseq
        %v454 = vand.u32 %v453, 127
        %v455 = vadd.s32 %v437, 8
        %v456 = vadd.s32 %v437, 16
        %v457 = vadd.s32 %v437, 24
        %v458 = vadd.s32 %v437, 32
        %v459 = vadd.s32 %v437, 40
        %v460 = vadd.s32 %v437, 48
        %v461 = vadd.s32 %v437, 56
        %v462 = vadd.s32 %v437, 64
        %v463 = vadd.s32 %v437, 72
        %v464 = vadd.s32 %v437, 80
        %v465 = vadd.s32 %v437, 88
        %v466 = vadd.s32 %v437, 96
        %v467 = vadd.s32 %v437, 104
        %v468 = vadd.s32 %v437, 112
        %v469 = vadd.s32 %v437, 120
        %vm470 = vcmp.eq.s32.totalorder %v437, %v454
        %vm471 = vcmp.eq.s32.totalorder %v455, %v454
        %vm472 = vcmp.eq.s32.totalorder %v456, %v454
        %vm473 = vcmp.eq.s32.totalorder %v457, %v454
        %vm474 = vcmp.eq.s32.totalorder %v458, %v454
        %vm475 = vcmp.eq.s32.totalorder %v459, %v454
        %vm476 = vcmp.eq.s32.totalorder %v460, %v454
        %vm477 = vcmp.eq.s32.totalorder %v461, %v454
        %vm478 = vcmp.eq.s32.totalorder %v462, %v454
        %vm479 = vcmp.eq.s32.totalorder %v463, %v454
        %vm480 = vcmp.eq.s32.totalorder %v464, %v454
        %vm481 = vcmp.eq.s32.totalorder %v465, %v454
        %vm482 = vcmp.eq.s32.totalorder %v466, %v454
        %vm483 = vcmp.eq.s32.totalorder %v467, %v454
        %vm484 = vcmp.eq.s32.totalorder %v468, %v454
        %vm485 = vcmp.eq.s32.totalorder %v469, %v454
        %v486 = vld [vmem:[#allocation2] sm:$0x1]
        %v488 = vperm.slane %v486, 0
        %v490 = vsel %vm470, %v488, 0.0
        %v491 = vsel %vm471, %v488, 0.0
        %v492 = vsel %vm472, %v488, 0.0
        %v493 = vsel %vm473, %v488, 0.0
        %v494 = vsel %vm474, %v488, 0.0
        %v495 = vsel %vm475, %v488, 0.0
        %v496 = vsel %vm476, %v488, 0.0
        %v497 = vsel %vm477, %v488, 0.0
        %v498 = vsel %vm478, %v488, 0.0
        %v499 = vsel %vm479, %v488, 0.0
        %v500 = vsel %vm480, %v488, 0.0
        %v501 = vsel %vm481, %v488, 0.0
        %v502 = vsel %vm482, %v488, 0.0
        %v503 = vsel %vm483, %v488, 0.0
        %v504 = vsel %vm484, %v488, 0.0
        %v505 = vsel %vm485, %v488, 0.0
        %506 = vadd.xlane.f32.xlu0 %v490
        %v507 = vpop.xlane.xlu0 %506
        %508 = vadd.xlane.f32.xlu0 %v491
        %v509 = vpop.xlane.xlu0 %508
        %510 = vadd.xlane.f32.xlu0 %v492
        %v511 = vpop.xlane.xlu0 %510
        %512 = vadd.xlane.f32.xlu0 %v493
        %v513 = vpop.xlane.xlu0 %512
        %514 = vadd.xlane.f32.xlu0 %v494
        %v515 = vpop.xlane.xlu0 %514
        %516 = vadd.xlane.f32.xlu0 %v495
        %v517 = vpop.xlane.xlu0 %516
        %518 = vadd.xlane.f32.xlu0 %v496
        %v519 = vpop.xlane.xlu0 %518
        %520 = vadd.xlane.f32.xlu0 %v497
        %v521 = vpop.xlane.xlu0 %520
        %522 = vadd.xlane.f32.xlu0 %v498
        %v523 = vpop.xlane.xlu0 %522
        %524 = vadd.xlane.f32.xlu0 %v499
        %v525 = vpop.xlane.xlu0 %524
        %526 = vadd.xlane.f32.xlu0 %v500
        %v527 = vpop.xlane.xlu0 %526
        %528 = vadd.xlane.f32.xlu0 %v501
        %v529 = vpop.xlane.xlu0 %528
        %530 = vadd.xlane.f32.xlu0 %v502
        %v531 = vpop.xlane.xlu0 %530
        %532 = vadd.xlane.f32.xlu0 %v503
        %v533 = vpop.xlane.xlu0 %532
        %534 = vadd.xlane.f32.xlu0 %v504
        %v535 = vpop.xlane.xlu0 %534
        %536 = vadd.xlane.f32.xlu0 %v505
        %v537 = vpop.xlane.xlu0 %536
        %v538 = vstv 0
        %v539 = vadd.s32 %v538, %v437
        %v540 = vadd.s32 %v538, %v455
        %v541 = vadd.s32 %v538, %v456
        %v542 = vadd.s32 %v538, %v457
        %v543 = vadd.s32 %v538, %v458
        %v544 = vadd.s32 %v538, %v459
        %v545 = vadd.s32 %v538, %v460
        %v546 = vadd.s32 %v538, %v461
        %v547 = vadd.s32 %v538, %v462
        %v548 = vadd.s32 %v538, %v463
        %v549 = vadd.s32 %v538, %v464
        %v550 = vadd.s32 %v538, %v465
        %v551 = vadd.s32 %v538, %v466
        %v552 = vadd.s32 %v538, %v467
        %v553 = vadd.s32 %v538, %v468
        %v554 = vadd.s32 %v538, %v469
        %v556 = vperm.slane %v451, 0
        %vm558 = vcmp.gt.f32.partialorder %v507, %v556
        %vm559 = vcmp.gt.f32.partialorder %v509, %v556
        %vm560 = vcmp.gt.f32.partialorder %v511, %v556
        %vm561 = vcmp.gt.f32.partialorder %v513, %v556
        %vm562 = vcmp.gt.f32.partialorder %v515, %v556
        %vm563 = vcmp.gt.f32.partialorder %v517, %v556
        %vm564 = vcmp.gt.f32.partialorder %v519, %v556
        %vm565 = vcmp.gt.f32.partialorder %v521, %v556
        %vm566 = vcmp.gt.f32.partialorder %v523, %v556
        %vm567 = vcmp.gt.f32.partialorder %v525, %v556
        %vm568 = vcmp.gt.f32.partialorder %v527, %v556
        %vm569 = vcmp.gt.f32.partialorder %v529, %v556
        %vm570 = vcmp.gt.f32.partialorder %v531, %v556
        %vm571 = vcmp.gt.f32.partialorder %v533, %v556
        %vm572 = vcmp.gt.f32.partialorder %v535, %v556
        %vm573 = vcmp.gt.f32.partialorder %v537, %v556
        %vm574 = vcmp.eq.f32.partialorder %v507, %v556
        %vm575 = vcmp.eq.f32.partialorder %v509, %v556
        %vm576 = vcmp.eq.f32.partialorder %v511, %v556
        %vm577 = vcmp.eq.f32.partialorder %v513, %v556
        %vm578 = vcmp.eq.f32.partialorder %v515, %v556
        %vm579 = vcmp.eq.f32.partialorder %v517, %v556
        %vm580 = vcmp.eq.f32.partialorder %v519, %v556
        %vm581 = vcmp.eq.f32.partialorder %v521, %v556
        %vm582 = vcmp.eq.f32.partialorder %v523, %v556
        %vm583 = vcmp.eq.f32.partialorder %v525, %v556
        %vm584 = vcmp.eq.f32.partialorder %v527, %v556
        %vm585 = vcmp.eq.f32.partialorder %v529, %v556
        %vm586 = vcmp.eq.f32.partialorder %v531, %v556
        %vm587 = vcmp.eq.f32.partialorder %v533, %v556
        %vm588 = vcmp.eq.f32.partialorder %v535, %v556
        %vm589 = vcmp.eq.f32.partialorder %v537, %v556
        %vm590 = vcmp.lt.s32.totalorder %v539, %v454
        %vm591 = vcmp.lt.s32.totalorder %v540, %v454
        %vm592 = vcmp.lt.s32.totalorder %v541, %v454
        %vm593 = vcmp.lt.s32.totalorder %v542, %v454
        %vm594 = vcmp.lt.s32.totalorder %v543, %v454
        %vm595 = vcmp.lt.s32.totalorder %v544, %v454
        %vm596 = vcmp.lt.s32.totalorder %v545, %v454
        %vm597 = vcmp.lt.s32.totalorder %v546, %v454
        %vm598 = vcmp.lt.s32.totalorder %v547, %v454
        %vm599 = vcmp.lt.s32.totalorder %v548, %v454
        %vm600 = vcmp.lt.s32.totalorder %v549, %v454
        %vm601 = vcmp.lt.s32.totalorder %v550, %v454
        %vm602 = vcmp.lt.s32.totalorder %v551, %v454
        %vm603 = vcmp.lt.s32.totalorder %v552, %v454
        %vm604 = vcmp.lt.s32.totalorder %v553, %v454
        %vm605 = vcmp.lt.s32.totalorder %v554, %v454
        %vm606 = vmand %vm574, %vm590
        %vm607 = vmand %vm575, %vm591
        %vm608 = vmand %vm576, %vm592
        %vm609 = vmand %vm577, %vm593
        %vm610 = vmand %vm578, %vm594
        %vm611 = vmand %vm579, %vm595
        %vm612 = vmand %vm580, %vm596
        %vm613 = vmand %vm581, %vm597
        %vm614 = vmand %vm582, %vm598
        %vm615 = vmand %vm583, %vm599
        %vm616 = vmand %vm584, %vm600
        %vm617 = vmand %vm585, %vm601
        %vm618 = vmand %vm586, %vm602
        %vm619 = vmand %vm587, %vm603
        %vm620 = vmand %vm588, %vm604
        %vm621 = vmand %vm589, %vm605
        %vm622 = vmor %vm558, %vm606
        %vm623 = vmor %vm559, %vm607
        %vm624 = vmor %vm560, %vm608
        %vm625 = vmor %vm561, %vm609
        %vm626 = vmor %vm562, %vm610
        %vm627 = vmor %vm563, %vm611
        %vm628 = vmor %vm564, %vm612
        %vm629 = vmor %vm565, %vm613
        %vm630 = vmor %vm566, %vm614
        %vm631 = vmor %vm567, %vm615
        %vm632 = vmor %vm568, %vm616
        %vm633 = vmor %vm569, %vm617
        %vm634 = vmor %vm570, %vm618
        %vm635 = vmor %vm571, %vm619
        %vm636 = vmor %vm572, %vm620
        %vm637 = vmor %vm573, %vm621
        %v638 = vsel %vm622, 1, 0
        %v639 = vsel %vm623, 1, 0
        %v640 = vsel %vm624, 1, 0
        %v641 = vsel %vm625, 1, 0
        %v642 = vsel %vm626, 1, 0
        %v643 = vsel %vm627, 1, 0
        %v644 = vsel %vm628, 1, 0
        %v645 = vsel %vm629, 1, 0
        %v646 = vsel %vm630, 1, 0
        %v647 = vsel %vm631, 1, 0
        %v648 = vsel %vm632, 1, 0
        %v649 = vsel %vm633, 1, 0
        %v650 = vsel %vm634, 1, 0
        %v651 = vsel %vm635, 1, 0
        %v652 = vsel %vm636, 1, 0
        %v653 = vsel %vm637, 1, 0
        %v654 = vcvt.s32.f32 %v638
        %v655 = vcvt.s32.f32 %v639
        %v656 = vcvt.s32.f32 %v640
        %v657 = vcvt.s32.f32 %v641
        %v658 = vcvt.s32.f32 %v642
        %v659 = vcvt.s32.f32 %v643
        %v660 = vcvt.s32.f32 %v644
        %v661 = vcvt.s32.f32 %v645
        %v662 = vcvt.s32.f32 %v646
        %v663 = vcvt.s32.f32 %v647
        %v664 = vcvt.s32.f32 %v648
        %v665 = vcvt.s32.f32 %v649
        %v666 = vcvt.s32.f32 %v650
        %v667 = vcvt.s32.f32 %v651
        %v668 = vcvt.s32.f32 %v652
        %v669 = vcvt.s32.f32 %v653
        %v670 = vpack.c.bf16 %v655, %v654
        %v671 = vpack.c.bf16 %v657, %v656
        %v672 = vpack.c.bf16 %v659, %v658
        %v673 = vpack.c.bf16 %v661, %v660
        %v674 = vpack.c.bf16 %v663, %v662
        %v675 = vpack.c.bf16 %v665, %v664
        %v676 = vpack.c.bf16 %v667, %v666
        %v677 = vpack.c.bf16 %v669, %v668
        %678 = vmatpush.bf16.msra.mxu0 %v677
        %679 = vmatpush.bf16.msra.mxu0 %v676
        %680 = vmatpush.bf16.msra.mxu0 %v675
        %681 = vmatpush.bf16.msra.mxu0 %v674
        %682 = vmatpush.bf16.msra.mxu0 %v673
        %683 = vmatpush.bf16.msra.mxu0 %v672
        %684 = vmatpush.bf16.msra.mxu0 %v671
        %685 = vmatpush.bf16.msra.mxu0 %v670
        %686 = vmatmul.bf16.gmra.mxu0 1065369472
        %v687 = vpop.f32.mrf.mxu0
        %v688 = vadd.f32 0.0, %v687
        %v689 = vpop.f32.mrf.mxu0
        %690 = vdwg.mxu0
        %v691 = vmul.f32 %v390, 3.0
        %v692 = vmin.f32 %v691, 127.0
        %vm693 = vcmp.lt.f32.partialorder %v688, %v692
        %vm694 = vmand %vm693, %vm375
        %vm695 = vmor %vm376, %vm694
        %v696 = vsel %vm695, %v449, 0.0
        %v697 = vsel %vm379, %v696, 0.0
        %698 = vadd.xlane.f32.xlu0 %v697
        %v699 = vpop.xlane.xlu0 %698
        %v700 = vrot.slane %v699, 4
        %v701 = vadd.f32 %v699, %v700
        %v702 = vrot.slane %v701, 2
        %v703 = vadd.f32 %v701, %v702
        %v704 = vrot.slane %v703, 1
        %v705 = vadd.f32 %v703, %v704
        %s706 = vtos %v705
        %v707 = vstv %s414
        %vm708 = vcmask 0
        %709 = vst.msk [vmem:[%s366] sm:$0x1] %vm708, %v707
        %v710 = vstv %s706
        %711 = vst.msk [vmem:[%s369] sm:$0x1] %vm708, %v710
        %712 = vst.msk [vmem:[%s372] sm:$0x1] %vm708, %v390
        %p713 = scmp.lt.s32.totalorder %s24, 1
        %s714 = scalar_select %p713, %s24, 1
        %s715 = scalar_lea.vmem %s4, %s714
        %p716 = scmp.lt.s32.totalorder %s24, 1
        %s717 = scalar_select %p716, %s24, 1
        %s718 = scalar_lea.vmem %s5, %s717
        %p719 = scmp.lt.s32.totalorder %s24, 1
        %s720 = scalar_select %p719, %s24, 1
        %s721 = scalar_lea.vmem %s6, %s720
        // Predicated region
        $region49: #{tpu_custom_call.1} parent=35 // pred_check
          %p722 = pneg %p146
        $region50: #{tpu_custom_call.1} parent=35 // pred_check_branch
          %724 = sbr.rel (%p722) target = $region52
        $region51: #{tpu_custom_call.1} parent=35 // pred_region
          _
        $region52: #{tpu_custom_call.1} parent=35 // pred_fallthru
          _
        // Predicated region
        $region53: #{tpu_custom_call.1} parent=35 // pred_check
          %p725 = pneg %p172
        $region54: #{tpu_custom_call.1} parent=35 // pred_check_branch
          %727 = sbr.rel (%p725) target = $region56
        $region55: #{tpu_custom_call.1} parent=35 // pred_region
          _
        $region56: #{tpu_custom_call.1} parent=35 // pred_fallthru
          _
        // Predicated region
        $region57: #{tpu_custom_call.1} parent=35 // pred_check
          %p728 = pneg %p198
        $region58: #{tpu_custom_call.1} parent=35 // pred_check_branch
          %730 = sbr.rel (%p728) target = $region60
        $region59: #{tpu_custom_call.1} parent=35 // pred_region
          _
        $region60: #{tpu_custom_call.1} parent=35 // pred_fallthru
          _
      $region36: #{tpu_custom_call.1} parent=5 // pred_fallthru
        _
      %p731 = scmp.le.s32.totalorder 2, %s19
      // Predicated region
      $region61: #{tpu_custom_call.1} parent=5 // pred_check
        %p732 = pneg %p731
      $region62: #{tpu_custom_call.1} parent=5 // pred_check_branch
        %734 = sbr.rel (%p732) target = $region64
      $region63: #{tpu_custom_call.1} parent=5 // pred_region
        %s735 = ssub.s32 %s19, 2
        // Predicated region
        $region65: #{tpu_custom_call.1} parent=63 // pred_check
          %p736 = pneg %p152
        $region66: #{tpu_custom_call.1} parent=63 // pred_check_branch
          %738 = sbr.rel (%p736) target = $region68
        $region67: #{tpu_custom_call.1} parent=63 // pred_region
          %p739 = scmp.lt.s32.totalorder %s25, 1
          %s740 = scalar_select %p739, %s25, 1
          %s741 = scalar_lea.vmem %s4, %s740
        $region68: #{tpu_custom_call.1} parent=63 // pred_fallthru
          _
        // Predicated region
        $region69: #{tpu_custom_call.1} parent=63 // pred_check
          %p742 = pneg %p178
        $region70: #{tpu_custom_call.1} parent=63 // pred_check_branch
          %744 = sbr.rel (%p742) target = $region72
        $region71: #{tpu_custom_call.1} parent=63 // pred_region
          %p745 = scmp.lt.s32.totalorder %s25, 1
          %s746 = scalar_select %p745, %s25, 1
          %s747 = scalar_lea.vmem %s5, %s746
        $region72: #{tpu_custom_call.1} parent=63 // pred_fallthru
          _
        // Predicated region
        $region73: #{tpu_custom_call.1} parent=63 // pred_check
          %p748 = pneg %p204
        $region74: #{tpu_custom_call.1} parent=63 // pred_check_branch
          %750 = sbr.rel (%p748) target = $region76
        $region75: #{tpu_custom_call.1} parent=63 // pred_region
          %p751 = scmp.lt.s32.totalorder %s25, 1
          %s752 = scalar_select %p751, %s25, 1
          %s753 = scalar_lea.vmem %s6, %s752
        $region76: #{tpu_custom_call.1} parent=63 // pred_fallthru
          _
      $region64: #{tpu_custom_call.1} parent=5 // pred_fallthru
        _
    $region6: #{tpu_custom_call.1} parent=1 // loop_footer
      %s23 = sadd.s32 1, %s19
    $region7: #{tpu_custom_call.1} parent=1 // loop_footer_branch
      %18 = sbr.rel target = $region3
    $region8: #{tpu_custom_call.1} parent=1 // loop_exit
      _
    %754 = vsyncpa [#allocation4], 1
    %s755 = scalar_lea.sflag [#allocation4], 1
    %756 = vsyncpa %s755, 1
    %757 = vsyncpa [#allocation6], 1
    %s758 = scalar_lea.sflag [#allocation6], 1
    %759 = vsyncpa %s758, 1

</llo_original>
